<compile_context>
chip_gen: v7x
topology: tpu7x:2x2x1
jax: 0.10.0
libtpu: 0.0.40
codegen_flags: <defaults>
</compile_context>

<pallas_src>
import jax
import jax.numpy as jnp
from jax.experimental import pallas as pl
from jax.experimental.pallas import tpu as pltpu


def _square_kernel(x_ref, o_ref):
    # Elementwise square on the whole VMEM tile (single VPU mul per element).
    x = x_ref[...]
    o_ref[...] = x * x


def _sublane_multiple(dtype) -> int:
    # Packed-sublane granularity: f32 -> 8, bf16 -> 16, int8/fp8 -> 32.
    itemsize = jnp.dtype(dtype).itemsize
    return max(8, 32 // max(1, itemsize))


_TARGET_TILE_BYTES = 4 << 20   # 4 MiB per tile buffer (per perf review)
_VMEM_LIMIT_BYTES = 32 << 20   # 2 arrays x 2 buffers x 4 MiB = 16 MiB + headroom
_LANE_CHOICES = (1024, 512, 256, 128)


def _square_2d(x2d: jax.Array, donate: bool) -> jax.Array:
    """Tiled, pipelined square of a lane-dense (rows, lanes) array."""
    rows, lanes = x2d.shape
    itemsize = jnp.dtype(x2d.dtype).itemsize
    n = rows * lanes
    sub = _sublane_multiple(x2d.dtype)

    # ~4 MiB row tiles, aligned to the dtype's sublane packing.
    tile_r = max(sub, (_TARGET_TILE_BYTES // (lanes * itemsize)) // sub * sub)

    # v7x megacore: keep >= 2 grid programs (one per TensorCore) whenever a
    # sublane-aligned split is possible and the tensor is big enough to matter.
    if rows >= 2 * sub and n * itemsize > (1 << 20):
        half_r = max(sub, (pl.cdiv(rows, 2) // sub) * sub)
        tile_r = min(tile_r, half_r)

    tile_r = min(tile_r, rows)  # tiny inputs -> single full-extent block

    grid = (pl.cdiv(rows, tile_r),)
    cost = pl.CostEstimate(flops=n, transcendentals=0,
                           bytes_accessed=2 * n * itemsize)

    return pl.pallas_call(
        _square_kernel,
        out_shape=jax.ShapeDtypeStruct((rows, lanes), x2d.dtype),
        grid=grid,
        in_specs=[pl.BlockSpec((tile_r, lanes), lambda i: (i, 0))],
        out_specs=pl.BlockSpec((tile_r, lanes), lambda i: (i, 0)),
        compiler_params=pltpu.CompilerParams(
            dimension_semantics=("parallel",),
            vmem_limit_bytes=_VMEM_LIMIT_BYTES),
        cost_estimate=cost,
        input_output_aliases=({0: 0} if donate else {}),
    )(x2d)


def act_square(x: jax.Array, *, donate: bool = False) -> jax.Array:
    """Pallas implementation of torch.square(x). Works for any shape/dtype.

    Set donate=True when the caller donates x (in-place via output aliasing).
    """
    orig_shape = x.shape
    n = x.size
    if n == 0:
        return x.reshape(orig_shape)

    # Preferred path: lane-dense 2-D view, last dim a large multiple of 128.
    lanes = next((l for l in _LANE_CHOICES if n % l == 0), None)
    if lanes is not None:
        out = _square_2d(x.reshape(n // lanes, lanes), donate)
        return out.reshape(orig_shape)

    # Size not a multiple of 128: pad the flat view up to the next multiple of
    # 128 so the lane-dense, pipelined path is used, then slice back. This
    # replaces the old single full-extent block (which risked VMEM OOM on
    # large odd-sized tensors and had no DMA/compute overlap).
    pad = (-n) % 128
    flat = jnp.pad(x.reshape(-1), (0, pad))
    n_pad = n + pad
    lanes = next(l for l in _LANE_CHOICES if n_pad % l == 0)
    out = _square_2d(flat.reshape(n_pad // lanes, lanes), donate)
    return out.reshape(-1)[:n].reshape(orig_shape)


# TODO(synk): in the full EEGNet graph, fuse this square into the adjacent
# conv/pool kernel (or use jnp.square so XLA fuses it) to kill the standalone
# HBM round trip.


if __name__ == "__main__":
    key = jax.random.PRNGKey(0)

    # Primary demo: NCHW input matching the EEGNet usage, batch=2, C=4, H=16, W=16.
    x = jax.random.normal(key, (2, 4, 16, 16), dtype=jnp.float32)
    y = jax.block_until_ready(act_square(x))
    assert y.shape == x.shape and y.dtype == x.dtype
    assert jnp.array_equal(y, x * x), "mismatch vs reference (primary)"

    # Tiled grid path with a ragged row count (partial edge block + >=2 programs).
    x2 = jax.random.normal(jax.random.PRNGKey(0), (3, 8, 64, 250), dtype=jnp.float32)
    y2 = jax.block_until_ready(act_square(x2))
    assert jnp.array_equal(y2, x2 * x2), "mismatch vs reference (tiled)"

    # Non-128-multiple path (now padded + tiled instead of one giant block).
    x3 = jax.random.normal(jax.random.PRNGKey(0), (5, 7), dtype=jnp.float32)
    y3 = jax.block_until_ready(act_square(x3))
    assert jnp.array_equal(y3, x3 * x3), "mismatch vs reference (padded)"

    # bf16 sanity (different sublane packing) + donate path.
    x4 = jax.random.normal(jax.random.PRNGKey(0), (4, 16, 128), dtype=jnp.bfloat16)
    y4 = jax.block_until_ready(act_square(x4, donate=True))
    assert jnp.array_equal(y4, x4 * x4), "mismatch vs reference (bf16/donate)"

    print("KERNEL_OK")
</pallas_src>

<mosaic_0001>
module attributes {stable_mosaic.version = 11 : i64} {
  func.func @_square_kernel(%arg0: i32, %arg1: memref<2x1024xf32, #tpu.memory_space<vmem>>, %arg2: memref<2x1024xf32, #tpu.memory_space<vmem>>) attributes {dimension_semantics = [#tpu.dimension_semantics<parallel>], iteration_bounds = array<i64: 1>, scalar_prefetch = 0 : i64, scratch_operands = 0 : i64, tpu.core_type = #tpu.core_type<tc>, window_params = [{transform_indices = @transform_0, window_bounds = array<i64: 2, 1024>}, {transform_indices = @transform_1, window_bounds = array<i64: 2, 1024>}]} {
    %c0 = arith.constant 0 : index
    %c0_0 = arith.constant 0 : index
    %0 = vector.load %arg1[%c0, %c0_0] : memref<2x1024xf32, #tpu.memory_space<vmem>>, vector<2x1024xf32>
    %1 = arith.mulf %0, %0 : vector<2x1024xf32>
    %c0_1 = arith.constant 0 : index
    %c0_2 = arith.constant 0 : index
    %2 = vector.load %arg2[%c0_1, %c0_2] : memref<2x1024xf32, #tpu.memory_space<vmem>>, vector<2x1024xf32>
    tpu.vector_store %arg2[%c0_1, %c0_2], %1 {strides = array<i32>} : memref<2x1024xf32, #tpu.memory_space<vmem>>, vector<2x1024xf32>,
    return
  }
  func.func @transform_0(%arg0: i32) -> (i32, i32) {
    %c0_i32 = arith.constant 0 : i32
    %c0_i32_0 = arith.constant 0 : i32
    return %arg0, %c0_i32 : i32, i32
  }
  func.func @transform_1(%arg0: i32) -> (i32, i32) {
    %c0_i32 = arith.constant 0 : i32
    %c0_i32_0 = arith.constant 0 : i32
    return %arg0, %c0_i32 : i32, i32
  }
}

</mosaic_0001>

<llo_original>
// kernel: tpu_custom_call.1
$region0: #{tpu_custom_call.1}
  #allocation0 [shape = 'u32[]', space=smem, size = 0x4, offset = 0x4, fixed_abs, tag = 'smem constant byte address 0x4 - core index']
  #allocation1 [shape = 'u32[144,128]{1,0:T(1,128)}', space=vmem, size = 0x12000, scoped, tag = 'internal scratch']
  %s0 = inlined_call_operand.hbm [shape: f32[2,1024], index: 0, kind: input, shape index: {}]
  %s1 = inlined_call_operand.hbm [shape: f32[2,1024], index: 1, kind: output, shape index: {}]
  %s2 = sld [smem:[#allocation0]]
  $region18: #{tpu_custom_call.1} parent=0
    _
  %s4 = ssub.s32 1, %s2
  %s5 = scalar_select 0, %s4, %s2
  $region1: #{tpu_custom_call.1} parent=0
    #allocation2 [shape = 'u8[8192]{0}', space=vmem, size = 0x2000, scoped, tag = 'input window, operand 0, single buffered']
    #allocation3 [shape = 's32[1]{0}', space=sflag, size = 0x4, scoped, tag = 'scoped memory for tpu_custom_call.1']
    #allocation4 [shape = 's32[1]{0}', space=sflag, size = 0x4, scoped, tag = 'scoped memory for tpu_custom_call.1']
    #allocation5 [shape = 'u8[8192]{0}', space=vmem, size = 0x2000, scoped, tag = 'output window, operand 0, single buffered']
    %6 = vsyncpa [#allocation3], 0
    %7 = vsyncpa [#allocation4], 0
    // Predicated region
    $region2: #{tpu_custom_call.1} parent=1 // pred_check
      _
    $region3: #{tpu_custom_call.1} parent=1 // pred_check_branch
      %9 = sbr.rel (0) target = $region5
    $region4: #{tpu_custom_call.1} parent=1 // pred_region
      %s11 = ssub.s32 256, 256
      %12 = vsyncadd [#allocation3], %s11
      %s14 = sshll.u32 [#allocation2], 4
      %s15 = int_to_ptr.vmem [resolvable:$true] %s14
      %17 = dma.hbm_to_vmem [thread:$0]  %s0, 256, %s15, [#allocation3]
    $region5: #{tpu_custom_call.1} parent=1 // pred_fallthru
      _
    // Predicated region
    $region6: #{tpu_custom_call.1} parent=1 // pred_check
      _
    $region7: #{tpu_custom_call.1} parent=1 // pred_check_branch
      %19 = sbr.rel (0) target = $region9
    $region8: #{tpu_custom_call.1} parent=1 // pred_region
      %20 = dma.done [#allocation3], 256
    $region9: #{tpu_custom_call.1} parent=1 // pred_fallthru
      _
    %v21 = vld [vmem:[#allocation2] sm:$0xff]
    %v22 = vld [vmem:[#allocation2 + $0x8] sm:$0xff]
    %v23 = vmul.f32 %v21, %v21
    %v24 = vmul.f32 %v22, %v22
    %25 = vst [vmem:[#allocation5] sm:$0xff] %v23
    %26 = vst [vmem:[#allocation5 + $0x8] sm:$0xff] %v24
    // Predicated region
    $region10: #{tpu_custom_call.1} parent=1 // pred_check
      _
    $region11: #{tpu_custom_call.1} parent=1 // pred_check_branch
      %28 = sbr.rel (0) target = $region13
    $region12: #{tpu_custom_call.1} parent=1 // pred_region
      %s30 = ssub.s32 256, 256
      %31 = vsyncadd [#allocation4], %s30
      %s33 = sshll.u32 [#allocation5], 4
      %s34 = int_to_ptr.vmem [resolvable:$true] %s33
      %36 = dma.vmem_to_hbm [thread:$0]  %s34, 256, %s1, [#allocation4]
    $region13: #{tpu_custom_call.1} parent=1 // pred_fallthru
      _
    // Predicated region
    $region14: #{tpu_custom_call.1} parent=1 // pred_check
      _
    $region15: #{tpu_custom_call.1} parent=1 // pred_check_branch
      %38 = sbr.rel (0) target = $region17
    $region16: #{tpu_custom_call.1} parent=1 // pred_region
      %39 = dma.done [#allocation4], 256
    $region17: #{tpu_custom_call.1} parent=1 // pred_fallthru
      _
    %40 = vsyncpa [#allocation3], 1
    %41 = vsyncpa [#allocation4], 1

</llo_original>
